<compile_context>
chip_gen: v7x
topology: tpu7x:2x2x1
jax: 0.10.0
libtpu: 0.0.40
codegen_flags: <defaults>
</compile_context>

<pallas_src>
import numpy as np

import jax
import jax.numpy as jnp
from jax.experimental import pallas as pl
from jax.experimental.pallas import tpu as pltpu

NUM_HEADS = 14          # 13 heads of width 4 + 1 head of width 2
HEAD_WIDTH = 4          # padded per-head class width
HEADS_PAD = 128         # heads padded to a full lane width
N_PAD = HEAD_WIDTH * HEADS_PAD  # 512 fused logit columns (class-major layout)
NEG_BIG = -1e30         # bias for padded (fake) classes so they never win argmax


def classifier_kernel(x_ref, w_ref, b_ref, out_ref, acc_ref):
    # x_ref  : (TB, TS, D)      input tile
    # w_ref  : (D, N_PAD)  f32  packed head weights (1/seq_len folded in)
    # b_ref  : (1, N_PAD)  f32  packed head biases (-1e30 on padded classes)
    # out_ref: (TB, HEADS_PAD) int32 padded predictions (cols >= 14 are junk)
    # acc_ref: (TB, D) f32 VMEM scratch -- running sum over the seq axis
    s = pl.program_id(1)

    @pl.when(s == 0)
    def _init():
        acc_ref[...] = jnp.zeros_like(acc_ref)

    x = x_ref[...]
    if x.dtype != jnp.float32:          # allow bf16 inputs; accumulate in f32
        x = x.astype(jnp.float32)
    acc_ref[...] += jnp.sum(x, axis=1)  # sum over the seq tile -> (TB, D)

    @pl.when(s == pl.num_programs(1) - 1)
    def _finalize():
        # AvgPool's 1/seq_len is already folded into w_ref, so the raw sum is
        # used directly. One fused MXU matmul for all 14 heads.
        logits = jnp.dot(acc_ref[...], w_ref[...],
                         preferred_element_type=jnp.float32) + b_ref[...]
        # Class-major layout: class c of head h lives in lane c*HEADS_PAD + h.
        l0 = logits[:, 0 * HEADS_PAD:1 * HEADS_PAD]
        l1 = logits[:, 1 * HEADS_PAD:2 * HEADS_PAD]
        l2 = logits[:, 2 * HEADS_PAD:3 * HEADS_PAD]
        l3 = logits[:, 3 * HEADS_PAD:4 * HEADS_PAD]
        m = jnp.maximum(jnp.maximum(l0, l1), jnp.maximum(l2, l3))
        # First-max tie-breaking, matching torch.argmax. (All-NaN rows would
        # fall through to class 3; not expected in practice.)
        pred = jnp.where(l0 == m, 0,
               jnp.where(l1 == m, 1,
               jnp.where(l2 == m, 2, 3))).astype(jnp.int32)
        out_ref[...] = pred  # single lane-dense (TB, 128) store


def _pick_tile(n, cap, align):
    """Largest t dividing n with t <= cap; t == n is always legal, otherwise
    t must be a multiple of `align` (TPU (8,128) block constraint)."""
    if n <= cap:
        return n
    for t in range(cap, 0, -1):
        if n % t == 0 and t % align == 0:
            return t
    return n


def _pick_tiles(B, S, D, itemsize):
    # Keep a single x tile around <= 8 MiB so 2x double-buffering fits the
    # scoped-VMEM defaults on every generation (16 MiB v5e, 32 MiB v6e/v7x,
    # and v7x's smaller 64 MiB physical VMEM).
    budget_elems = (8 * 1024 * 1024) // itemsize
    ts_cap = max(8, min(256, budget_elems // max(D, 1)))
    TS = _pick_tile(S, ts_cap, 8)
    tb_cap = max(1, min(128, budget_elems // max(TS * D, 1)))
    TB = _pick_tile(B, tb_cap, 8)
    return TB, TS


def classifier_forward(inputs_embeds, w_packed, b_packed):
    """inputs_embeds: (B, S, D); w_packed: (D, 512) f32; b_packed: (1, 512) f32.
    Returns (B, 14) int32 predictions (torch returns int64; x64 is off)."""
    B, S, D = inputs_embeds.shape
    TB, TS = _pick_tiles(B, S, D, jnp.dtype(inputs_embeds.dtype).itemsize)

    # Fold AvgPool1d's 1/seq_len into the fused weight (one tiny host-side op).
    w_scaled = w_packed * jnp.float32(1.0 / S)

    out_padded = pl.pallas_call(
        classifier_kernel,
        out_shape=jax.ShapeDtypeStruct((B, HEADS_PAD), jnp.int32),
        grid_spec=pltpu.PrefetchScalarGridSpec(
            num_scalar_prefetch=0,
            grid=(B // TB, S // TS),
            in_specs=[
                pl.BlockSpec((TB, TS, D), lambda i, s: (i, s, 0)),
                pl.BlockSpec((D, N_PAD), lambda i, s: (0, 0)),
                pl.BlockSpec((1, N_PAD), lambda i, s: (0, 0)),
            ],
            out_specs=pl.BlockSpec((TB, HEADS_PAD), lambda i, s: (i, 0)),
            scratch_shapes=[pltpu.VMEM((TB, D), jnp.float32)],
        ),
        compiler_params=pltpu.CompilerParams(
            dimension_semantics=("parallel", "arbitrary")),
    )(inputs_embeds, w_scaled, b_packed)
    return out_padded[:, :NUM_HEADS]


def make_head_params(key, embeds_dim):
    """Synthetic per-head params matching the module: 13 x Linear(D, 4) +
    1 x Linear(D, 2). Returns list of (weight (out, D), bias (out,))."""
    heads = []
    for h in range(NUM_HEADS):
        out = 2 if h == NUM_HEADS - 1 else 4
        key, kw, kb = jax.random.split(key, 3)
        w = jax.random.normal(kw, (out, embeds_dim), jnp.float32) * 0.05
        b = jax.random.normal(kb, (out,), jnp.float32) * 0.05
        heads.append((w, b))
    return heads


def pack_heads(heads, embeds_dim):
    """Pack per-head Linear params into the fused, class-major layout:
    column c*HEADS_PAD + h = class c of head h. Padded classes get zero
    weights and a -1e30 bias; padded heads (>=14) are zero and sliced off."""
    w_np = np.zeros((embeds_dim, N_PAD), np.float32)
    b_np = np.zeros((1, N_PAD), np.float32)
    for h, (w, b) in enumerate(heads):
        w = np.asarray(w)
        b = np.asarray(b)
        out = w.shape[0]
        for c in range(HEAD_WIDTH):
            col = c * HEADS_PAD + h
            if c < out:
                w_np[:, col] = w[c]
                b_np[0, col] = b[c]
            else:
                b_np[0, col] = NEG_BIG
    return jnp.asarray(w_np), jnp.asarray(b_np)


def reference_forward(x, heads):
    pooled = jnp.mean(x, axis=1)  # (B, D)
    preds = []
    for (w, b) in heads:
        logits = pooled @ w.T + b
        preds.append(jnp.argmax(logits, axis=1).astype(jnp.int32))
    return jnp.stack(preds, axis=1)  # (B, 14)


if __name__ == "__main__":
    key = jax.random.PRNGKey(0)
    k_params, k_x = jax.random.split(key)

    batch, seq_len, embeds_dim = 2, 8, 32
    heads = make_head_params(k_params, embeds_dim)
    w_packed, b_packed = pack_heads(heads, embeds_dim)
    x = jax.random.normal(k_x, (batch, seq_len, embeds_dim), jnp.float32)

    preds = classifier_forward(x, w_packed, b_packed)
    preds = jax.block_until_ready(preds)

    ref = jax.block_until_ready(reference_forward(x, heads))
    assert preds.shape == (batch, NUM_HEADS), preds.shape
    assert jnp.array_equal(preds, ref), (preds, ref)

    print("KERNEL_OK")
</pallas_src>

<mosaic_0001>
module attributes {stable_mosaic.version = 11 : i64} {
  func.func @classifier_kernel(%arg0: i32, %arg1: i32, %arg2: memref<2x8x32xf32, #tpu.memory_space<vmem>>, %arg3: memref<32x512xf32, #tpu.memory_space<vmem>>, %arg4: memref<1x512xf32, #tpu.memory_space<vmem>>, %arg5: memref<2x128xi32, #tpu.memory_space<vmem>>, %arg6: memref<2x32xf32, #tpu.memory_space<vmem>>) attributes {dimension_semantics = [#tpu.dimension_semantics<parallel>, #tpu.dimension_semantics<arbitrary>], iteration_bounds = array<i64: 1, 1>, scalar_prefetch = 0 : i64, scratch_operands = 1 : i64, tpu.core_type = #tpu.core_type<tc>, window_params = [{transform_indices = @transform_0, window_bounds = array<i64: 2, 8, 32>}, {pipeline_mode = #tpu.pipeline_mode<synchronous>, transform_indices = @transform_1, window_bounds = array<i64: 32, 512>}, {pipeline_mode = #tpu.pipeline_mode<synchronous>, transform_indices = @transform_2, window_bounds = array<i64: 1, 512>}, {transform_indices = @transform_3, window_bounds = array<i64: 2, 128>}]} {
    %c0_i32 = arith.constant 0 : i32
    %0 = arith.cmpi eq, %arg1, %c0_i32 : i32
    %1 = arith.extui %0 : i1 to i32
    %c0_i32_0 = arith.constant 0 : i32
    %2 = arith.cmpi ne, %1, %c0_i32_0 : i32
    scf.if %2 {
      %cst_9 = arith.constant 0.000000e+00 : f32
      %11 = vector.broadcast %cst_9 : f32 to vector<2x32xf32>
      %c0_10 = arith.constant 0 : index
      %c0_11 = arith.constant 0 : index
      %12 = vector.load %arg6[%c0_10, %c0_11] : memref<2x32xf32, #tpu.memory_space<vmem>>, vector<2x32xf32>
      tpu.vector_store %arg6[%c0_10, %c0_11], %11 {strides = array<i32>} : memref<2x32xf32, #tpu.memory_space<vmem>>, vector<2x32xf32>,
    } else {
    }
    %c0 = arith.constant 0 : index
    %c0_1 = arith.constant 0 : index
    %c0_2 = arith.constant 0 : index
    %3 = vector.load %arg2[%c0, %c0_1, %c0_2] : memref<2x8x32xf32, #tpu.memory_space<vmem>>, vector<2x8x32xf32>
    %c0_3 = arith.constant 0 : index
    %c0_4 = arith.constant 0 : index
    %4 = vector.load %arg6[%c0_3, %c0_4] : memref<2x32xf32, #tpu.memory_space<vmem>>, vector<2x32xf32>
    %cst = arith.constant dense<0.000000e+00> : vector<2x32xf32>
    %5 = vector.multi_reduction <add>, %3, %cst [1] : vector<2x8x32xf32> to vector<2x32xf32>
    %6 = arith.addf %4, %5 : vector<2x32xf32>
    %c0_5 = arith.constant 0 : index
    %c0_6 = arith.constant 0 : index
    %7 = vector.load %arg6[%c0_5, %c0_6] : memref<2x32xf32, #tpu.memory_space<vmem>>, vector<2x32xf32>
    tpu.vector_store %arg6[%c0_5, %c0_6], %6 {strides = array<i32>} : memref<2x32xf32, #tpu.memory_space<vmem>>, vector<2x32xf32>,
    %c0_i32_7 = arith.constant 0 : i32
    %8 = arith.cmpi eq, %arg1, %c0_i32_7 : i32
    %9 = arith.extui %8 : i1 to i32
    %c0_i32_8 = arith.constant 0 : i32
    %10 = arith.cmpi ne, %9, %c0_i32_8 : i32
    scf.if %10 {
      %c0_9 = arith.constant 0 : index
      %c0_10 = arith.constant 0 : index
      %11 = vector.load %arg6[%c0_9, %c0_10] : memref<2x32xf32, #tpu.memory_space<vmem>>, vector<2x32xf32>
      %c0_11 = arith.constant 0 : index
      %c0_12 = arith.constant 0 : index
      %12 = vector.load %arg3[%c0_11, %c0_12] : memref<32x512xf32, #tpu.memory_space<vmem>>, vector<32x512xf32>
      %cst_13 = arith.constant dense<0.000000e+00> : vector<2x512xf32>
      %13 = tpu.matmul %11, %12, %cst_13 {dimension_numbers = #tpu.dot_dimension_numbers<[1], [0], [0], [1], [0, 0, 1, 1], [], []>} : vector<2x32xf32>, vector<32x512xf32>, vector<2x512xf32> -> vector<2x512xf32>
      %c0_14 = arith.constant 0 : index
      %c0_15 = arith.constant 0 : index
      %14 = vector.load %arg4[%c0_14, %c0_15] : memref<1x512xf32, #tpu.memory_space<vmem>>, vector<1x512xf32>
      %15 = vector.broadcast %14 : vector<1x512xf32> to vector<2x512xf32>
      %16 = arith.addf %13, %15 : vector<2x512xf32>
      %17 = vector.extract_strided_slice %16 {offsets = [0, 0], sizes = [2, 128], strides = [1, 1]} : vector<2x512xf32> to vector<2x128xf32>
      %18 = vector.extract_strided_slice %16 {offsets = [0, 128], sizes = [2, 128], strides = [1, 1]} : vector<2x512xf32> to vector<2x128xf32>
      %19 = vector.extract_strided_slice %16 {offsets = [0, 256], sizes = [2, 128], strides = [1, 1]} : vector<2x512xf32> to vector<2x128xf32>
      %20 = vector.extract_strided_slice %16 {offsets = [0, 384], sizes = [2, 128], strides = [1, 1]} : vector<2x512xf32> to vector<2x128xf32>
      %21 = arith.maximumf %17, %18 : vector<2x128xf32>
      %22 = arith.maximumf %19, %20 : vector<2x128xf32>
      %23 = arith.maximumf %21, %22 : vector<2x128xf32>
      %24 = arith.cmpf oeq, %17, %23 : vector<2x128xf32>
      %25 = arith.cmpf oeq, %18, %23 : vector<2x128xf32>
      %26 = arith.cmpf oeq, %19, %23 : vector<2x128xf32>
      %c2_i32 = arith.constant 2 : i32
      %c3_i32 = arith.constant 3 : i32
      %27 = vector.broadcast %c2_i32 : i32 to vector<2x128xi32>
      %28 = vector.broadcast %c3_i32 : i32 to vector<2x128xi32>
      %29 = arith.select %26, %27, %28 : vector<2x128xi1>, vector<2x128xi32>
      %c1_i32 = arith.constant 1 : i32
      %30 = vector.broadcast %c1_i32 : i32 to vector<2x128xi32>
      %31 = arith.select %25, %30, %29 : vector<2x128xi1>, vector<2x128xi32>
      %c0_i32_16 = arith.constant 0 : i32
      %32 = vector.broadcast %c0_i32_16 : i32 to vector<2x128xi32>
      %33 = arith.select %24, %32, %31 : vector<2x128xi1>, vector<2x128xi32>
      %c0_17 = arith.constant 0 : index
      %c0_18 = arith.constant 0 : index
      %34 = vector.load %arg5[%c0_17, %c0_18] : memref<2x128xi32, #tpu.memory_space<vmem>>, vector<2x128xi32>
      tpu.vector_store %arg5[%c0_17, %c0_18], %33 {strides = array<i32>} : memref<2x128xi32, #tpu.memory_space<vmem>>, vector<2x128xi32>,
    } else {
    }
    return
  }
  func.func @transform_0(%arg0: i32, %arg1: i32) -> (i32, i32, i32) {
    %c0_i32 = arith.constant 0 : i32
    %c0_i32_0 = arith.constant 0 : i32
    return %arg0, %arg1, %c0_i32 : i32, i32, i32
  }
  func.func @transform_1(%arg0: i32, %arg1: i32) -> (i32, i32) {
    %c0_i32 = arith.constant 0 : i32
    %c0_i32_0 = arith.constant 0 : i32
    %c0_i32_1 = arith.constant 0 : i32
    return %c0_i32, %c0_i32_0 : i32, i32
  }
  func.func @transform_2(%arg0: i32, %arg1: i32) -> (i32, i32) {
    %c0_i32 = arith.constant 0 : i32
    %c0_i32_0 = arith.constant 0 : i32
    %c0_i32_1 = arith.constant 0 : i32
    return %c0_i32, %c0_i32_0 : i32, i32
  }
  func.func @transform_3(%arg0: i32, %arg1: i32) -> (i32, i32) {
    %c0_i32 = arith.constant 0 : i32
    %c0_i32_0 = arith.constant 0 : i32
    return %arg0, %c0_i32 : i32, i32
  }
}

</mosaic_0001>

<llo_original>
// kernel: tpu_custom_call.1
$region0: #{tpu_custom_call.1}
  #allocation0 [shape = 'u32[]', space=smem, size = 0x4, offset = 0x4, fixed_abs, tag = 'smem constant byte address 0x4 - core index']
  #allocation1 [shape = 'u32[144,128]{1,0:T(1,128)}', space=vmem, size = 0x12000, scoped, tag = 'internal scratch']
  #allocation2 [shape = 'f32[2,32]{1,0:T(2,128)}', space=vmem, size = 0x400, scoped, tag = 'scratch operand']
  %s0 = inlined_call_operand.hbm [shape: f32[2,8,32], index: 0, kind: input, shape index: {}]
  %s1 = inlined_call_operand.hbm [shape: f32[32,512], index: 1, kind: input, shape index: {}]
  %s2 = inlined_call_operand.vmem [shape: f32[1,512], index: 2, kind: input, shape index: {}]
  %s3 = inlined_call_operand.hbm [shape: s32[2,128], index: 3, kind: output, shape index: {}]
  %s4 = sld [smem:[#allocation0]]
  $region38: #{tpu_custom_call.1} parent=0
    _
  %s6 = ssub.s32 1, %s4
  %s7 = scalar_select 0, %s6, %s4
  $region1: #{tpu_custom_call.1} parent=0
    #allocation3 [shape = 'u8[8192]{0}', space=vmem, size = 0x2000, scoped, tag = 'input window, operand 0, single buffered']
    #allocation4 [shape = 's32[1]{0}', space=sflag, size = 0x4, scoped, tag = 'scoped memory for tpu_custom_call.1']
    #allocation5 [shape = 's32[1]{0}', space=sflag, size = 0x4, scoped, tag = 'scoped memory for tpu_custom_call.1']
    #allocation6 [shape = 'u8[65536]{0}', space=vmem, size = 0x10000, scoped, tag = 'input window, operand 1, single buffered']
    #allocation7 [shape = 's32[1]{0}', space=sflag, size = 0x4, scoped, tag = 'scoped memory for tpu_custom_call.1']
    #allocation8 [shape = 'u8[1024]{0}', space=vmem, size = 0x400, scoped, tag = 'output window, operand 0, single buffered']
    %8 = vsyncpa [#allocation4], 0
    %9 = vsyncpa [#allocation7], 0
    %10 = vsyncpa [#allocation5], 0
    // Predicated region
    $region2: #{tpu_custom_call.1} parent=1 // pred_check
      _
    $region3: #{tpu_custom_call.1} parent=1 // pred_check_branch
      %12 = sbr.rel (0) target = $region5
    $region4: #{tpu_custom_call.1} parent=1 // pred_region
      %s14 = ssub.s32 256, 256
      %15 = vsyncadd [#allocation4], %s14
      %s16 = sshll.u32 [#allocation3], 4
      %s17 = int_to_ptr.vmem [resolvable:$true] %s16
      %22 = dma.hbm_to_vmem [thread:$0]  %s0, 256, %s17, [#allocation4], 128, 128, 8
    $region5: #{tpu_custom_call.1} parent=1 // pred_fallthru
      _
    // Predicated region
    $region6: #{tpu_custom_call.1} parent=1 // pred_check
      _
    $region7: #{tpu_custom_call.1} parent=1 // pred_check_branch
      %24 = sbr.rel (0) target = $region9
    $region8: #{tpu_custom_call.1} parent=1 // pred_region
      %s26 = ssub.s32 2048, 2048
      %27 = vsyncadd [#allocation7], %s26
      %s28 = sshll.u32 [#allocation6], 4
      %s29 = int_to_ptr.vmem [resolvable:$true] %s28
      %34 = dma.hbm_to_vmem [thread:$0]  %s1, 2048, %s29, [#allocation7], 512, 512, 32
    $region9: #{tpu_custom_call.1} parent=1 // pred_fallthru
      _
    // Predicated region
    $region10: #{tpu_custom_call.1} parent=1 // pred_check
      _
    $region11: #{tpu_custom_call.1} parent=1 // pred_check_branch
      %36 = sbr.rel (0) target = $region13
    $region12: #{tpu_custom_call.1} parent=1 // pred_region
      _
    $region13: #{tpu_custom_call.1} parent=1 // pred_fallthru
      _
    // Predicated region
    $region14: #{tpu_custom_call.1} parent=1 // pred_check
      _
    $region15: #{tpu_custom_call.1} parent=1 // pred_check_branch
      %38 = sbr.rel (0) target = $region17
    $region16: #{tpu_custom_call.1} parent=1 // pred_region
      %39 = dma.done [#allocation4], 256
    $region17: #{tpu_custom_call.1} parent=1 // pred_fallthru
      _
    // Predicated region
    $region18: #{tpu_custom_call.1} parent=1 // pred_check
      _
    $region19: #{tpu_custom_call.1} parent=1 // pred_check_branch
      %41 = sbr.rel (0) target = $region21
    $region20: #{tpu_custom_call.1} parent=1 // pred_region
      %42 = dma.done [#allocation7], 2048
    $region21: #{tpu_custom_call.1} parent=1 // pred_fallthru
      _
    %p43 = scmp.eq.s32.totalorder 0, 0
    // Predicated region
    $region22: #{tpu_custom_call.1} parent=1 // pred_check
      %p44 = pneg %p43
    $region23: #{tpu_custom_call.1} parent=1 // pred_check_branch
      %46 = sbr.rel (%p44) target = $region25
    $region24: #{tpu_custom_call.1} parent=1 // pred_region
      %vm47 = vcmask 254976
      %48 = vst.msk [vmem:[#allocation2] sm:$0x3] %vm47, 0.0
    $region25: #{tpu_custom_call.1} parent=1 // pred_fallthru
      _
    %v49 = vld [vmem:[#allocation3] sm:$0xff]
    %v50 = vld [vmem:[#allocation3 + $0x8] sm:$0xff]
    %v51 = vld [vmem:[#allocation2] sm:$0x3]
    %vm52 = vcmask 261120
    %v53 = vsel %vm52, %v49, 0.0
    %v54 = vrot.slane %v53, 4
    %v55 = vadd.f32 %v53, %v54
    %v56 = vrot.slane %v55, 2
    %v57 = vadd.f32 %v55, %v56
    %v58 = vrot.slane %v57, 1
    %v59 = vadd.f32 %v57, %v58
    %v60 = vsel %vm52, %v50, 0.0
    %v61 = vrot.slane %v60, 4
    %v62 = vadd.f32 %v60, %v61
    %v63 = vrot.slane %v62, 2
    %v64 = vadd.f32 %v62, %v63
    %v65 = vrot.slane %v64, 1
    %v66 = vadd.f32 %v64, %v65
    %vm69 = vcmask 1041409
    %v70 = vsel %vm69, %v66, %v59
    %v72 = vadd.f32 %v51, %v70
    %vm73 = vcmask 254976
    %74 = vst.msk [vmem:[#allocation2] sm:$0x3] %vm73, %v72
    // Predicated region
    $region26: #{tpu_custom_call.1} parent=1 // pred_check
      %p75 = pneg %p43
    $region27: #{tpu_custom_call.1} parent=1 // pred_check_branch
      %77 = sbr.rel (%p75) target = $region29
    $region28: #{tpu_custom_call.1} parent=1 // pred_region
      %v78 = vld [vmem:[#allocation2] sm:$0x3]
      %v79 = vld [vmem:[#allocation6] sm:$0xff]
      %v80 = vld [vmem:[#allocation6 + $0x8] sm:$0xff]
      %v81 = vld [vmem:[#allocation6 + $0x10] sm:$0xff]
      %v82 = vld [vmem:[#allocation6 + $0x18] sm:$0xff]
      %v83 = vld [vmem:[#allocation6 + $0x20] sm:$0xff]
      %v84 = vld [vmem:[#allocation6 + $0x28] sm:$0xff]
      %v85 = vld [vmem:[#allocation6 + $0x30] sm:$0xff]
      %v86 = vld [vmem:[#allocation6 + $0x38] sm:$0xff]
      %v87 = vld [vmem:[#allocation6 + $0x40] sm:$0xff]
      %v88 = vld [vmem:[#allocation6 + $0x48] sm:$0xff]
      %v89 = vld [vmem:[#allocation6 + $0x50] sm:$0xff]
      %v90 = vld [vmem:[#allocation6 + $0x58] sm:$0xff]
      %v91 = vld [vmem:[#allocation6 + $0x60] sm:$0xff]
      %v92 = vld [vmem:[#allocation6 + $0x68] sm:$0xff]
      %v93 = vld [vmem:[#allocation6 + $0x70] sm:$0xff]
      %v94 = vld [vmem:[#allocation6 + $0x78] sm:$0xff]
      %v95 = vld [vmem:[%s2] sm:$0xf]
      %v97 = vlaneseq
      %v98 = vshrl.u32 %v97, 7
      %v99 = vsub.s32 0, %v98
      %v100 = vrot.slane %v95, %v99
      %v101 = vlaneseq
      %v102 = vshrl.u32 %v101, 7
      %v103 = vsub.s32 1, %v102
      %v104 = vrot.slane %v95, %v103
      %v105 = vlaneseq
      %v106 = vshrl.u32 %v105, 7
      %v107 = vsub.s32 2, %v106
      %v108 = vrot.slane %v95, %v107
      %v109 = vlaneseq
      %v110 = vshrl.u32 %v109, 7
      %v111 = vsub.s32 3, %v110
      %v112 = vrot.slane %v95, %v111
      %v118 = vsel %vm52, %v78, 0
      %120 = vmatprep.subr.mxu0 %v80
      %121 = vmatpush1.msra.mxu0 %v79
      %122 = vmatprep.subr.mxu0 %v84
      %123 = vmatpush1.msra.mxu0 %v83
      %124 = vmatprep.subr.mxu0 %v88
      %125 = vmatpush1.msra.mxu0 %v87
      %126 = vmatprep.subr.mxu0 %v92
      %127 = vmatpush1.msra.mxu0 %v91
      %128 = vmatprep.subr.mxu0 0.0
      %129 = vmatpush1.msra.mxu0 0.0
      %130 = vmatprep.subr.mxu0 0.0
      %131 = vmatpush1.msra.mxu0 0.0
      %132 = vmatprep.subr.mxu0 0.0
      %133 = vmatpush1.msra.mxu0 0.0
      %134 = vmatprep.subr.mxu0 0.0
      %135 = vmatpush1.msra.mxu0 0.0
      %136 = vmatprep.subr.mxu0 0.0
      %137 = vmatpush1.msra.mxu0 0.0
      %138 = vmatprep.subr.mxu0 0.0
      %139 = vmatpush1.msra.mxu0 0.0
      %140 = vmatprep.subr.mxu0 0.0
      %141 = vmatpush1.msra.mxu0 0.0
      %142 = vmatprep.subr.mxu0 0.0
      %143 = vmatpush1.msra.mxu0 0.0
      %144 = vmatprep.subr.mxu0 0.0
      %145 = vmatpush1.msra.mxu0 0.0
      %146 = vmatprep.subr.mxu0 0.0
      %147 = vmatpush1.msra.mxu0 0.0
      %148 = vmatprep.subr.mxu0 0.0
      %149 = vmatpush1.msra.mxu0 0.0
      %150 = vmatprep.subr.mxu0 0.0
      %151 = vmatpush1.msra.mxu0 0.0
      %152 = vmatprep.subr.mxu0 0.0
      %153 = vmatpush1.msra.mxu0 0.0
      %154 = vmatprep.subr.mxu0 0.0
      %155 = vmatpush1.msra.mxu0 0.0
      %156 = vmatprep.subr.mxu0 0.0
      %157 = vmatpush1.msra.mxu0 0.0
      %158 = vmatprep.subr.mxu0 0.0
      %159 = vmatpush1.msra.mxu0 0.0
      %160 = vmatprep.subr.mxu0 0.0
      %161 = vmatpush1.msra.mxu0 0.0
      %162 = vmatprep.subr.mxu0 0.0
      %163 = vmatpush1.msra.mxu0 0.0
      %164 = vmatprep.subr.mxu0 0.0
      %165 = vmatpush1.msra.mxu0 0.0
      %166 = vmatprep.subr.mxu0 0.0
      %167 = vmatpush1.msra.mxu0 0.0
      %168 = vmatprep.subr.mxu0 0.0
      %169 = vmatpush1.msra.mxu0 0.0
      %170 = vmatprep.subr.mxu0 0.0
      %171 = vmatpush1.msra.mxu0 0.0
      %172 = vmatprep.subr.mxu0 0.0
      %173 = vmatpush1.msra.mxu0 0.0
      %174 = vmatprep.subr.mxu0 0.0
      %175 = vmatpush1.msra.mxu0 0.0
      %176 = vmatprep.subr.mxu0 0.0
      %177 = vmatpush1.msra.mxu0 0.0
      %178 = vmatprep.subr.mxu0 0.0
      %179 = vmatpush1.msra.mxu0 0.0
      %180 = vmatprep.subr.mxu0 0.0
      %181 = vmatpush1.msra.mxu0 0.0
      %182 = vmatprep.subr.mxu0 0.0
      %183 = vmatpush1.msra.mxu0 0.0
      %184 = vmatprep.mubr.f32.mxu0 0.0
      %185 = vmatmul.mubr.f32.gmra.mrb[0].mxu0 %v118
      %v186 = vpop.f32.mrb[0].mxu0
      %v187 = vadd.f32 %v100, %v186
      %v188 = vpop.f32.mrb[0].mxu0
      %v189 = vadd.f32 %v104, %v188
      %190 = vdwg.mxu0
      %191 = vmatprep.subr.mxu0 %v82
      %192 = vmatpush1.msra.mxu0 %v81
      %193 = vmatprep.subr.mxu0 %v86
      %194 = vmatpush1.msra.mxu0 %v85
      %195 = vmatprep.subr.mxu0 %v90
      %196 = vmatpush1.msra.mxu0 %v89
      %197 = vmatprep.subr.mxu0 %v94
      %198 = vmatpush1.msra.mxu0 %v93
      %199 = vmatprep.subr.mxu0 0.0
      %200 = vmatpush1.msra.mxu0 0.0
      %201 = vmatprep.subr.mxu0 0.0
      %202 = vmatpush1.msra.mxu0 0.0
      %203 = vmatprep.subr.mxu0 0.0
      %204 = vmatpush1.msra.mxu0 0.0
      %205 = vmatprep.subr.mxu0 0.0
      %206 = vmatpush1.msra.mxu0 0.0
      %207 = vmatprep.subr.mxu0 0.0
      %208 = vmatpush1.msra.mxu0 0.0
      %209 = vmatprep.subr.mxu0 0.0
      %210 = vmatpush1.msra.mxu0 0.0
      %211 = vmatprep.subr.mxu0 0.0
      %212 = vmatpush1.msra.mxu0 0.0
      %213 = vmatprep.subr.mxu0 0.0
      %214 = vmatpush1.msra.mxu0 0.0
      %215 = vmatprep.subr.mxu0 0.0
      %216 = vmatpush1.msra.mxu0 0.0
      %217 = vmatprep.subr.mxu0 0.0
      %218 = vmatpush1.msra.mxu0 0.0
      %219 = vmatprep.subr.mxu0 0.0
      %220 = vmatpush1.msra.mxu0 0.0
      %221 = vmatprep.subr.mxu0 0.0
      %222 = vmatpush1.msra.mxu0 0.0
      %223 = vmatprep.subr.mxu0 0.0
      %224 = vmatpush1.msra.mxu0 0.0
      %225 = vmatprep.subr.mxu0 0.0
      %226 = vmatpush1.msra.mxu0 0.0
      %227 = vmatprep.subr.mxu0 0.0
      %228 = vmatpush1.msra.mxu0 0.0
      %229 = vmatprep.subr.mxu0 0.0
      %230 = vmatpush1.msra.mxu0 0.0
      %231 = vmatprep.subr.mxu0 0.0
      %232 = vmatpush1.msra.mxu0 0.0
      %233 = vmatprep.subr.mxu0 0.0
      %234 = vmatpush1.msra.mxu0 0.0
      %235 = vmatprep.subr.mxu0 0.0
      %236 = vmatpush1.msra.mxu0 0.0
      %237 = vmatprep.subr.mxu0 0.0
      %238 = vmatpush1.msra.mxu0 0.0
      %239 = vmatprep.subr.mxu0 0.0
      %240 = vmatpush1.msra.mxu0 0.0
      %241 = vmatprep.subr.mxu0 0.0
      %242 = vmatpush1.msra.mxu0 0.0
      %243 = vmatprep.subr.mxu0 0.0
      %244 = vmatpush1.msra.mxu0 0.0
      %245 = vmatprep.subr.mxu0 0.0
      %246 = vmatpush1.msra.mxu0 0.0
      %247 = vmatprep.subr.mxu0 0.0
      %248 = vmatpush1.msra.mxu0 0.0
      %249 = vmatprep.subr.mxu0 0.0
      %250 = vmatpush1.msra.mxu0 0.0
      %251 = vmatprep.subr.mxu0 0.0
      %252 = vmatpush1.msra.mxu0 0.0
      %253 = vmatprep.subr.mxu0 0.0
      %254 = vmatpush1.msra.mxu0 0.0
      %255 = vmatprep.mubr.f32.mxu0 0.0
      %256 = vmatmul.mubr.f32.gmra.mrb[0].mxu0 %v118
      %v257 = vpop.f32.mrb[0].mxu0
      %v258 = vadd.f32 %v108, %v257
      %v259 = vpop.f32.mrb[0].mxu0
      %v260 = vadd.f32 %v112, %v259
      %261 = vdwg.mxu0
      %v262 = vmax.f32 %v187, %v189
      %v263 = vmax.f32 %v258, %v260
      %v264 = vmax.f32 %v262, %v263
      %vm265 = vcmp.eq.f32.partialorder %v187, %v264
      %vm266 = vcmp.eq.f32.partialorder %v189, %v264
      %vm267 = vcmp.eq.f32.partialorder %v258, %v264
      %v268 = vsel %vm267, 2, 3
      %v269 = vsel %vm266, 1, %v268
      %v270 = vsel %vm265, 0, %v269
      %271 = vst [vmem:[#allocation8] sm:$0x3] %v270
    $region29: #{tpu_custom_call.1} parent=1 // pred_fallthru
      _
    // Predicated region
    $region30: #{tpu_custom_call.1} parent=1 // pred_check
      _
    $region31: #{tpu_custom_call.1} parent=1 // pred_check_branch
      %273 = sbr.rel (0) target = $region33
    $region32: #{tpu_custom_call.1} parent=1 // pred_region
      %s275 = ssub.s32 32, 32
      %276 = vsyncadd [#allocation5], %s275
      %s278 = sshll.u32 [#allocation8], 4
      %s279 = int_to_ptr.vmem [resolvable:$true] %s278
      %281 = dma.vmem_to_hbm [thread:$0]  %s279, 32, %s3, [#allocation5]
    $region33: #{tpu_custom_call.1} parent=1 // pred_fallthru
      _
    // Predicated region
    $region34: #{tpu_custom_call.1} parent=1 // pred_check
      _
    $region35: #{tpu_custom_call.1} parent=1 // pred_check_branch
      %283 = sbr.rel (0) target = $region37
    $region36: #{tpu_custom_call.1} parent=1 // pred_region
      %284 = dma.done [#allocation5], 32
    $region37: #{tpu_custom_call.1} parent=1 // pred_fallthru
      _
    %285 = vsyncpa [#allocation4], 1
    %286 = vsyncpa [#allocation7], 1
    %287 = vsyncpa [#allocation5], 1

</llo_original>
